<compile_context>
chip_gen: v6e
topology: v6e:2x2x1
jax: 0.10.0
libtpu: 0.0.40
codegen_flags: <defaults>
</compile_context>

<pallas_src>
import functools

import jax
import jax.numpy as jnp
from jax.experimental import pallas as pl
from jax.experimental.pallas import tpu as pltpu


def _graphconv_kernel(tB, E1, N, ann_ref, adj_ref, w1_ref, b1_ref, w2_ref,
                      b2_ref, out_ref, res_ref):
    """One grid step: tB batches, all E-1 edges fused into a single matmul.

    ann_ref: [tB, N, F]            adj_ref: [tB, N, (E-1)*N]
    w1_ref:  [E-1, F, U]           b1_ref:  [E-1, 1, U]   (f32)
    w2_ref:  [F, U]                b2_ref:  [1, U]        (f32)
    out_ref: [tB, N, U] (f32)      res_ref: [(E-1)*N, U] VMEM scratch
    """
    for b in range(tB):                         # static unroll, tB is small
        ann = ann_ref[b]                        # [N, F]

        # Stacked per-edge linear1: res_ref[e*N:(e+1)*N] = ann @ W1_e + b1_e.
        for e in range(E1):                     # static unroll, E-1 is small
            res = jnp.dot(ann, w1_ref[e],
                          preferred_element_type=jnp.float32) + b1_ref[e]
            res_ref[e * N:(e + 1) * N, :] = res.astype(res_ref.dtype)

        # linear2 (kept in f32).
        lin2 = jnp.dot(ann, w2_ref[...],
                       preferred_element_type=jnp.float32) + b2_ref[...]

        # Fused edge reduction: [N, (E-1)*N] @ [(E-1)*N, U] == sum_e adj_e@res_e
        fused = jnp.dot(adj_ref[b], res_ref[...],
                        preferred_element_type=jnp.float32)

        out_ref[b] = jnp.tanh(fused + lin2).astype(out_ref.dtype)


def _pick_batch_block(B, N, target_rows=128):
    """Pick tB that divides B, targets ~target_rows rows per step and keeps at
    least two grid steps (so v7x's 2 TensorCores can split the batch axis)."""
    want = max(1, target_rows // max(N, 1))
    cap = max(1, B // 2)
    tb = max(1, min(B, want, cap))
    while B % tb:
        tb -= 1
    return tb


def graph_conv(adjacency, features, w1, b1, w2, b2, hidden=None,
               compute_dtype=jnp.bfloat16, batch_block=None):
    """Pallas GraphConv forward.

    adjacency: [B, E, N, N] f32
    features:  [B, N, Ffeat] f32
    hidden:    optional [B, N, Fh]; annotations = concat(hidden, features, -1)
    w1: [E-1, F, U]  b1: [E-1, 1, U]  w2: [F, U]  b2: [1, U]
    compute_dtype: dtype fed to the MXU (bf16 recommended); bias adds,
                   accumulation and tanh always stay f32.
    Returns (adjacency, features, out) with out: [B, N, U] f32.
    """
    if hidden is not None:
        annotations = jnp.concatenate((hidden, features), axis=-1)
    else:
        annotations = features

    B, E, N, _ = adjacency.shape
    F = annotations.shape[-1]
    U = w2.shape[-1]
    E1 = E - 1
    assert E1 >= 1, "GraphConv needs edges >= 2"
    assert w1.shape == (E1, F, U)

    # Pack adjacency[:, :-1] into one [B, N, (E-1)*N] slab so the whole edge
    # reduction becomes a single MXU contraction of length (E-1)*N.
    adj_fused = jnp.transpose(adjacency[:, :E1], (0, 2, 1, 3))
    adj_fused = adj_fused.reshape(B, N, E1 * N)
    K = E1 * N

    if batch_block is None:
        batch_block = _pick_batch_block(B, N)
    tB = batch_block
    assert B % tB == 0, "batch_block must divide the batch size"

    kernel = functools.partial(_graphconv_kernel, tB, E1, N)

    out = pl.pallas_call(
        kernel,
        out_shape=jax.ShapeDtypeStruct((B, N, U), jnp.float32),
        grid_spec=pltpu.PrefetchScalarGridSpec(
            num_scalar_prefetch=0,
            grid=(B // tB,),
            in_specs=[
                # annotations [B, N, F] -> block [tB, N, F]
                pl.BlockSpec((tB, N, F), lambda i: (i, 0, 0)),
                # fused adjacency [B, N, (E-1)*N] -> block [tB, N, (E-1)*N]
                pl.BlockSpec((tB, N, K), lambda i: (i, 0, 0)),
                # resident weights / biases (single block, no per-edge DMA)
                pl.BlockSpec((E1, F, U), lambda i: (0, 0, 0)),
                pl.BlockSpec((E1, 1, U), lambda i: (0, 0, 0)),
                pl.BlockSpec((F, U), lambda i: (0, 0)),
                pl.BlockSpec((1, U), lambda i: (0, 0)),
            ],
            out_specs=pl.BlockSpec((tB, N, U), lambda i: (i, 0, 0)),
            scratch_shapes=[pltpu.VMEM((K, U), compute_dtype)],
        ),
        compiler_params=pltpu.CompilerParams(
            dimension_semantics=("parallel",)),
    )(annotations.astype(compute_dtype),
      adj_fused.astype(compute_dtype),
      w1.astype(compute_dtype),
      b1.astype(jnp.float32),
      w2.astype(compute_dtype),
      b2.astype(jnp.float32))

    return adjacency, features, out


def _reference(adjacency, features, w1, b1, w2, b2):
    annotations = features
    res = jnp.einsum("bnf,efu->benu", annotations, w1) + b1[None]
    matrix = jnp.einsum("benm,bemu->benu", adjacency[:, :-1], res)
    total = (matrix.sum(axis=1)
             + jnp.einsum("bnf,fu->bnu", annotations, w2) + b2[None])
    return jnp.tanh(total)


if __name__ == "__main__":
    B, E, N, F, U = 2, 4, 16, 8, 32
    key = jax.random.PRNGKey(0)
    k_adj, k_feat, k_w1, k_b1, k_w2, k_b2 = jax.random.split(key, 6)

    adjacency = jax.random.uniform(k_adj, (B, E, N, N), dtype=jnp.float32)
    features = jax.random.normal(k_feat, (B, N, F), dtype=jnp.float32)

    # Deterministic nn.Linear-style init: uniform(-1/sqrt(F), 1/sqrt(F)).
    bound = 1.0 / jnp.sqrt(jnp.float32(F))
    w1 = jax.random.uniform(k_w1, (E - 1, F, U), minval=-bound, maxval=bound,
                            dtype=jnp.float32)
    b1 = jax.random.uniform(k_b1, (E - 1, 1, U), minval=-bound, maxval=bound,
                            dtype=jnp.float32)
    w2 = jax.random.uniform(k_w2, (F, U), minval=-bound, maxval=bound,
                            dtype=jnp.float32)
    b2 = jax.random.uniform(k_b2, (1, U), minval=-bound, maxval=bound,
                            dtype=jnp.float32)

    ref = _reference(adjacency, features, w1, b1, w2, b2)

    # Exactness check: f32 MXU path must match the reference tightly.
    _, _, out_f32 = graph_conv(adjacency, features, w1, b1, w2, b2,
                               compute_dtype=jnp.float32)
    out_f32 = jax.block_until_ready(out_f32)
    assert jnp.allclose(out_f32, ref, atol=1e-5, rtol=1e-5), "f32 mismatch"

    # Default fast path: bf16 MXU inputs; looser tolerance for bf16 rounding.
    _, _, out_bf16 = graph_conv(adjacency, features, w1, b1, w2, b2)
    out_bf16 = jax.block_until_ready(out_bf16)
    assert jnp.allclose(out_bf16, ref, atol=3e-2, rtol=3e-2), "bf16 mismatch"

    print("KERNEL_OK")
</pallas_src>

<mosaic_0001>
module attributes {stable_mosaic.version = 11 : i64} {
  func.func @_graphconv_kernel(%arg0: i32, %arg1: memref<1x16x8xf32, #tpu.memory_space<vmem>>, %arg2: memref<1x16x48xf32, #tpu.memory_space<vmem>>, %arg3: memref<3x8x32xf32, #tpu.memory_space<vmem>>, %arg4: memref<3x1x32xf32, #tpu.memory_space<vmem>>, %arg5: memref<8x32xf32, #tpu.memory_space<vmem>>, %arg6: memref<1x32xf32, #tpu.memory_space<vmem>>, %arg7: memref<1x16x32xf32, #tpu.memory_space<vmem>>, %arg8: memref<48x32xf32, #tpu.memory_space<vmem>>) attributes {dimension_semantics = [#tpu.dimension_semantics<parallel>], iteration_bounds = array<i64: 2>, scalar_prefetch = 0 : i64, scratch_operands = 1 : i64, tpu.core_type = #tpu.core_type<tc>, window_params = [{transform_indices = @transform_0, window_bounds = array<i64: 1, 16, 8>}, {transform_indices = @transform_1, window_bounds = array<i64: 1, 16, 48>}, {pipeline_mode = #tpu.pipeline_mode<synchronous>, transform_indices = @transform_2, window_bounds = array<i64: 3, 8, 32>}, {pipeline_mode = #tpu.pipeline_mode<synchronous>, transform_indices = @transform_3, window_bounds = array<i64: 3, 1, 32>}, {pipeline_mode = #tpu.pipeline_mode<synchronous>, transform_indices = @transform_4, window_bounds = array<i64: 8, 32>}, {pipeline_mode = #tpu.pipeline_mode<synchronous>, transform_indices = @transform_5, window_bounds = array<i64: 1, 32>}, {transform_indices = @transform_6, window_bounds = array<i64: 1, 16, 32>}]} {
    %c0 = arith.constant 0 : index
    %c0_0 = arith.constant 0 : index
    %c0_1 = arith.constant 0 : index
    %0 = vector.load %arg1[%c0, %c0_0, %c0_1] : memref<1x16x8xf32, #tpu.memory_space<vmem>>, vector<1x16x8xf32>
    %1 = vector.shape_cast %0 : vector<1x16x8xf32> to vector<16x8xf32>
    %c0_2 = arith.constant 0 : index
    %c0_3 = arith.constant 0 : index
    %c0_4 = arith.constant 0 : index
    %2 = vector.load %arg3[%c0_2, %c0_3, %c0_4] : memref<3x8x32xf32, #tpu.memory_space<vmem>>, vector<1x8x32xf32>
    %3 = vector.shape_cast %2 : vector<1x8x32xf32> to vector<8x32xf32>
    %cst = arith.constant dense<0.000000e+00> : vector<16x32xf32>
    %4 = tpu.matmul %1, %3, %cst {dimension_numbers = #tpu.dot_dimension_numbers<[1], [0], [0], [1], [0, 0, 1, 1], [], []>} : vector<16x8xf32>, vector<8x32xf32>, vector<16x32xf32> -> vector<16x32xf32>
    %c0_5 = arith.constant 0 : index
    %c0_6 = arith.constant 0 : index
    %c0_7 = arith.constant 0 : index
    %5 = vector.load %arg4[%c0_5, %c0_6, %c0_7] : memref<3x1x32xf32, #tpu.memory_space<vmem>>, vector<1x1x32xf32>
    %6 = vector.shape_cast %5 : vector<1x1x32xf32> to vector<1x32xf32>
    %7 = vector.broadcast %6 : vector<1x32xf32> to vector<16x32xf32>
    %8 = arith.addf %4, %7 : vector<16x32xf32>
    %c0_8 = arith.constant 0 : index
    %c0_9 = arith.constant 0 : index
    %9 = vector.load %arg8[%c0_8, %c0_9] : memref<48x32xf32, #tpu.memory_space<vmem>>, vector<16x32xf32>
    tpu.vector_store %arg8[%c0_8, %c0_9], %8 {strides = array<i32>} : memref<48x32xf32, #tpu.memory_space<vmem>>, vector<16x32xf32>,
    %c1 = arith.constant 1 : index
    %c0_10 = arith.constant 0 : index
    %c0_11 = arith.constant 0 : index
    %10 = vector.load %arg3[%c1, %c0_10, %c0_11] : memref<3x8x32xf32, #tpu.memory_space<vmem>>, vector<1x8x32xf32>
    %11 = vector.shape_cast %10 : vector<1x8x32xf32> to vector<8x32xf32>
    %cst_12 = arith.constant dense<0.000000e+00> : vector<16x32xf32>
    %12 = tpu.matmul %1, %11, %cst_12 {dimension_numbers = #tpu.dot_dimension_numbers<[1], [0], [0], [1], [0, 0, 1, 1], [], []>} : vector<16x8xf32>, vector<8x32xf32>, vector<16x32xf32> -> vector<16x32xf32>
    %c1_13 = arith.constant 1 : index
    %c0_14 = arith.constant 0 : index
    %c0_15 = arith.constant 0 : index
    %13 = vector.load %arg4[%c1_13, %c0_14, %c0_15] : memref<3x1x32xf32, #tpu.memory_space<vmem>>, vector<1x1x32xf32>
    %14 = vector.shape_cast %13 : vector<1x1x32xf32> to vector<1x32xf32>
    %15 = vector.broadcast %14 : vector<1x32xf32> to vector<16x32xf32>
    %16 = arith.addf %12, %15 : vector<16x32xf32>
    %c16 = arith.constant 16 : index
    %c0_16 = arith.constant 0 : index
    %17 = vector.load %arg8[%c16, %c0_16] : memref<48x32xf32, #tpu.memory_space<vmem>>, vector<16x32xf32>
    tpu.vector_store %arg8[%c16, %c0_16], %16 {strides = array<i32>} : memref<48x32xf32, #tpu.memory_space<vmem>>, vector<16x32xf32>,
    %c2 = arith.constant 2 : index
    %c0_17 = arith.constant 0 : index
    %c0_18 = arith.constant 0 : index
    %18 = vector.load %arg3[%c2, %c0_17, %c0_18] : memref<3x8x32xf32, #tpu.memory_space<vmem>>, vector<1x8x32xf32>
    %19 = vector.shape_cast %18 : vector<1x8x32xf32> to vector<8x32xf32>
    %cst_19 = arith.constant dense<0.000000e+00> : vector<16x32xf32>
    %20 = tpu.matmul %1, %19, %cst_19 {dimension_numbers = #tpu.dot_dimension_numbers<[1], [0], [0], [1], [0, 0, 1, 1], [], []>} : vector<16x8xf32>, vector<8x32xf32>, vector<16x32xf32> -> vector<16x32xf32>
    %c2_20 = arith.constant 2 : index
    %c0_21 = arith.constant 0 : index
    %c0_22 = arith.constant 0 : index
    %21 = vector.load %arg4[%c2_20, %c0_21, %c0_22] : memref<3x1x32xf32, #tpu.memory_space<vmem>>, vector<1x1x32xf32>
    %22 = vector.shape_cast %21 : vector<1x1x32xf32> to vector<1x32xf32>
    %23 = vector.broadcast %22 : vector<1x32xf32> to vector<16x32xf32>
    %24 = arith.addf %20, %23 : vector<16x32xf32>
    %c32 = arith.constant 32 : index
    %c0_23 = arith.constant 0 : index
    %25 = vector.load %arg8[%c32, %c0_23] : memref<48x32xf32, #tpu.memory_space<vmem>>, vector<16x32xf32>
    tpu.vector_store %arg8[%c32, %c0_23], %24 {strides = array<i32>} : memref<48x32xf32, #tpu.memory_space<vmem>>, vector<16x32xf32>,
    %c0_24 = arith.constant 0 : index
    %c0_25 = arith.constant 0 : index
    %26 = vector.load %arg5[%c0_24, %c0_25] : memref<8x32xf32, #tpu.memory_space<vmem>>, vector<8x32xf32>
    %cst_26 = arith.constant dense<0.000000e+00> : vector<16x32xf32>
    %27 = tpu.matmul %1, %26, %cst_26 {dimension_numbers = #tpu.dot_dimension_numbers<[1], [0], [0], [1], [0, 0, 1, 1], [], []>} : vector<16x8xf32>, vector<8x32xf32>, vector<16x32xf32> -> vector<16x32xf32>
    %c0_27 = arith.constant 0 : index
    %c0_28 = arith.constant 0 : index
    %28 = vector.load %arg6[%c0_27, %c0_28] : memref<1x32xf32, #tpu.memory_space<vmem>>, vector<1x32xf32>
    %29 = vector.broadcast %28 : vector<1x32xf32> to vector<16x32xf32>
    %30 = arith.addf %27, %29 : vector<16x32xf32>
    %c0_29 = arith.constant 0 : index
    %c0_30 = arith.constant 0 : index
    %c0_31 = arith.constant 0 : index
    %31 = vector.load %arg2[%c0_29, %c0_30, %c0_31] : memref<1x16x48xf32, #tpu.memory_space<vmem>>, vector<1x16x48xf32>
    %32 = vector.shape_cast %31 : vector<1x16x48xf32> to vector<16x48xf32>
    %c0_32 = arith.constant 0 : index
    %c0_33 = arith.constant 0 : index
    %33 = vector.load %arg8[%c0_32, %c0_33] : memref<48x32xf32, #tpu.memory_space<vmem>>, vector<48x32xf32>
    %cst_34 = arith.constant dense<0.000000e+00> : vector<16x32xf32>
    %34 = tpu.matmul %32, %33, %cst_34 {dimension_numbers = #tpu.dot_dimension_numbers<[1], [0], [0], [1], [0, 0, 1, 1], [], []>} : vector<16x48xf32>, vector<48x32xf32>, vector<16x32xf32> -> vector<16x32xf32>
    %35 = arith.addf %34, %30 : vector<16x32xf32>
    %36 = math.tanh %35 : vector<16x32xf32>
    %c0_35 = arith.constant 0 : index
    %c0_36 = arith.constant 0 : index
    %c0_37 = arith.constant 0 : index
    %37 = vector.load %arg7[%c0_35, %c0_36, %c0_37] : memref<1x16x32xf32, #tpu.memory_space<vmem>>, vector<1x16x32xf32>
    %38 = vector.shape_cast %37 : vector<1x16x32xf32> to vector<16x32xf32>
    %39 = vector.shape_cast %36 : vector<16x32xf32> to vector<1x16x32xf32>
    tpu.vector_store %arg7[%c0_35, %c0_36, %c0_37], %39 {strides = array<i32>} : memref<1x16x32xf32, #tpu.memory_space<vmem>>, vector<1x16x32xf32>,
    return
  }
  func.func @transform_0(%arg0: i32) -> (i32, i32, i32) {
    %c0_i32 = arith.constant 0 : i32
    %c0_i32_0 = arith.constant 0 : i32
    %c0_i32_1 = arith.constant 0 : i32
    return %arg0, %c0_i32, %c0_i32_0 : i32, i32, i32
  }
  func.func @transform_1(%arg0: i32) -> (i32, i32, i32) {
    %c0_i32 = arith.constant 0 : i32
    %c0_i32_0 = arith.constant 0 : i32
    %c0_i32_1 = arith.constant 0 : i32
    return %arg0, %c0_i32, %c0_i32_0 : i32, i32, i32
  }
  func.func @transform_2(%arg0: i32) -> (i32, i32, i32) {
    %c0_i32 = arith.constant 0 : i32
    %c0_i32_0 = arith.constant 0 : i32
    %c0_i32_1 = arith.constant 0 : i32
    %c0_i32_2 = arith.constant 0 : i32
    return %c0_i32, %c0_i32_0, %c0_i32_1 : i32, i32, i32
  }
  func.func @transform_3(%arg0: i32) -> (i32, i32, i32) {
    %c0_i32 = arith.constant 0 : i32
    %c0_i32_0 = arith.constant 0 : i32
    %c0_i32_1 = arith.constant 0 : i32
    %c0_i32_2 = arith.constant 0 : i32
    return %c0_i32, %c0_i32_0, %c0_i32_1 : i32, i32, i32
  }
  func.func @transform_4(%arg0: i32) -> (i32, i32) {
    %c0_i32 = arith.constant 0 : i32
    %c0_i32_0 = arith.constant 0 : i32
    %c0_i32_1 = arith.constant 0 : i32
    return %c0_i32, %c0_i32_0 : i32, i32
  }
  func.func @transform_5(%arg0: i32) -> (i32, i32) {
    %c0_i32 = arith.constant 0 : i32
    %c0_i32_0 = arith.constant 0 : i32
    %c0_i32_1 = arith.constant 0 : i32
    return %c0_i32, %c0_i32_0 : i32, i32
  }
  func.func @transform_6(%arg0: i32) -> (i32, i32, i32) {
    %c0_i32 = arith.constant 0 : i32
    %c0_i32_0 = arith.constant 0 : i32
    %c0_i32_1 = arith.constant 0 : i32
    return %arg0, %c0_i32, %c0_i32_0 : i32, i32, i32
  }
}

</mosaic_0001>

<llo_original>
// kernel: tpu_custom_call.1
$region0: #{tpu_custom_call.1}
  #allocation0 [shape = 'u32[]', space=smem, size = 0x4, offset = 0x4, fixed_abs, tag = 'smem constant byte address 0x4 - core index']
  #allocation1 [shape = 'u32[144,128]{1,0:T(1,128)}', space=vmem, size = 0x12000, scoped, tag = 'internal scratch']
  #allocation2 [shape = 'f32[48,32]{1,0:T(8,128)}', space=vmem, size = 0x6000, scoped, tag = 'scratch operand']
  %s0 = inlined_call_operand.vmem [shape: f32[2,16,8], index: 0, kind: input, shape index: {}]
  %s1 = inlined_call_operand.vmem [shape: f32[2,16,48], index: 1, kind: input, shape index: {}]
  %s2 = inlined_call_operand.hbm [shape: f32[3,8,32], index: 2, kind: input, shape index: {}]
  %s3 = inlined_call_operand.vmem [shape: f32[3,1,32], index: 3, kind: input, shape index: {}]
  %s4 = inlined_call_operand.vmem [shape: f32[8,32], index: 4, kind: input, shape index: {}]
  %s5 = inlined_call_operand.vmem [shape: f32[1,32], index: 5, kind: input, shape index: {}]
  %s6 = inlined_call_operand.hbm [shape: f32[2,16,32], index: 6, kind: output, shape index: {}]
  %s7 = sld [smem:[#allocation0]]
  $region61: #{tpu_custom_call.1} parent=0
    _
  %s9 = ssub.s32 1, %s7
  %s10 = scalar_select 0, %s9, %s7
  $region1: #{tpu_custom_call.1} parent=0
    #allocation3 [shape = 'u8[12288]{0}', space=vmem, size = 0x3000, scoped, tag = 'input window, operand 2, single buffered']
    #allocation4 [shape = 's32[2]{0}', space=sflag, size = 0x8, scoped, tag = 'scoped memory for tpu_custom_call.1']
    #allocation5 [shape = 's32[2]{0}', space=sflag, size = 0x8, scoped, tag = 'scoped memory for tpu_custom_call.1']
    #allocation6 [shape = 'u8[16384]{0}', space=vmem, size = 0x4000, scoped, tag = 'output window, operand 0']
    %11 = vsyncpa [#allocation4], 0
    %12 = vsyncpa [#allocation5], 0
    %s13 = scalar_lea.sflag [#allocation5], 1
    %14 = vsyncpa %s13, 0
    loop: start=0, step=1, limit=4
    $region2: #{tpu_custom_call.1} parent=1 // loop_pre_header
      _
    $region3: #{tpu_custom_call.1} parent=1 // loop_header
      %s16 = sphi 0, %s20
      %p17 = scmp.ge.s32.totalorder %s16, 4
      %s26 = sphi 0, %s28
      %s29 = sphi 0, %s26
      %s30 = sphi 0, %s29
      %s46 = sphi 0, %s30
      %s52 = sphi 0, %s54
      %s55 = sphi 0, %s52
      %s56 = sphi 0, %s55
      %s72 = sphi 0, %s56
      %s76 = sphi 0, %s76
      %s78 = sphi 0, %s76
      %s79 = sphi 0, %s78
      %s93 = sphi 0, %s79
      %s97 = sphi 0, %s97
      %s99 = sphi 0, %s97
      %s100 = sphi 0, %s99
      %s114 = sphi 0, %s100
      %s118 = sphi 0, %s118
      %s120 = sphi 0, %s118
      %s121 = sphi 0, %s120
      %s135 = sphi 0, %s121
      %s139 = sphi 0, %s139
      %s141 = sphi 0, %s139
      %s142 = sphi 0, %s141
      %s156 = sphi 0, %s142
      %s162 = sphi 0, %s164
      %s165 = sphi 0, %s162
      %s166 = sphi 0, %s165
      %s182 = sphi 0, %s166
    $region4: #{tpu_custom_call.1} parent=1 // loop_header_branch
      %19 = sbr.rel (%p17) target = $region8
    $region5: #{tpu_custom_call.1} parent=1 // loop_body
      %s21 = ssub.s32 %s16, 1
      %s22 = ssub.s32 %s16, 2
      %s23 = sadd.s32 %s16, 1
      %s24 = ssub.s32 %s16, %s23
      %p25 = scmp.eq.s32.totalorder %s24, 0
      %s27 = sadd.s32 %s26, 1
      %s28 = scalar_select %p25, %s26, %s27
      %p31 = pneg %p25
      %p32 = scmp.eq.s32.totalorder %s16, 1
      %p33 = por %p31, %p32
      %p34 = scmp.ne.s32.totalorder %s26, %s29
      %p35 = scmp.eq.s32.totalorder %s16, 0
      %p36 = por %p34, %p35
      %p37 = scmp.ne.s32.totalorder %s26, %s29
      %p38 = scmp.eq.s32.totalorder %s21, 1
      %p39 = por %p37, %p38
      %p40 = scmp.ne.s32.totalorder %s29, %s30
      %p41 = scmp.eq.s32.totalorder %s21, 0
      %p42 = por %p40, %p41
      %p43 = scmp.ne.s32.totalorder %s29, %s30
      %p44 = scmp.eq.s32.totalorder %s22, 1
      %p45 = por %p43, %p44
      %p47 = scmp.ne.s32.totalorder %s30, %s46
      %p48 = scmp.eq.s32.totalorder %s22, 0
      %p49 = por %p47, %p48
      %s50 = ssub.s32 %s16, %s23
      %p51 = scmp.eq.s32.totalorder %s50, 0
      %s53 = sadd.s32 %s52, 1
      %s54 = scalar_select %p51, %s52, %s53
      %p57 = pneg %p51
      %p58 = scmp.eq.s32.totalorder %s16, 1
      %p59 = por %p57, %p58
      %p60 = scmp.ne.s32.totalorder %s52, %s55
      %p61 = scmp.eq.s32.totalorder %s16, 0
      %p62 = por %p60, %p61
      %p63 = scmp.ne.s32.totalorder %s52, %s55
      %p64 = scmp.eq.s32.totalorder %s21, 1
      %p65 = por %p63, %p64
      %p66 = scmp.ne.s32.totalorder %s55, %s56
      %p67 = scmp.eq.s32.totalorder %s21, 0
      %p68 = por %p66, %p67
      %p69 = scmp.ne.s32.totalorder %s55, %s56
      %p70 = scmp.eq.s32.totalorder %s22, 1
      %p71 = por %p69, %p70
      %p73 = scmp.ne.s32.totalorder %s56, %s72
      %p74 = scmp.eq.s32.totalorder %s22, 0
      %p75 = por %p73, %p74
      %s77 = sadd.s32 %s76, 1
      %p80 = scmp.eq.s32.totalorder %s16, 1
      %p81 = scmp.ne.s32.totalorder %s76, %s78
      %p82 = scmp.eq.s32.totalorder %s16, 0
      %p83 = por %p81, %p82
      %p84 = scmp.ne.s32.totalorder %s76, %s78
      %p85 = scmp.eq.s32.totalorder %s21, 1
      %p86 = por %p84, %p85
      %p87 = scmp.ne.s32.totalorder %s78, %s79
      %p88 = scmp.eq.s32.totalorder %s21, 0
      %p89 = por %p87, %p88
      %p90 = scmp.ne.s32.totalorder %s78, %s79
      %p91 = scmp.eq.s32.totalorder %s22, 1
      %p92 = por %p90, %p91
      %p94 = scmp.ne.s32.totalorder %s79, %s93
      %p95 = scmp.eq.s32.totalorder %s22, 0
      %p96 = por %p94, %p95
      %s98 = sadd.s32 %s97, 1
      %p101 = scmp.eq.s32.totalorder %s16, 1
      %p102 = scmp.ne.s32.totalorder %s97, %s99
      %p103 = scmp.eq.s32.totalorder %s16, 0
      %p104 = por %p102, %p103
      %p105 = scmp.ne.s32.totalorder %s97, %s99
      %p106 = scmp.eq.s32.totalorder %s21, 1
      %p107 = por %p105, %p106
      %p108 = scmp.ne.s32.totalorder %s99, %s100
      %p109 = scmp.eq.s32.totalorder %s21, 0
      %p110 = por %p108, %p109
      %p111 = scmp.ne.s32.totalorder %s99, %s100
      %p112 = scmp.eq.s32.totalorder %s22, 1
      %p113 = por %p111, %p112
      %p115 = scmp.ne.s32.totalorder %s100, %s114
      %p116 = scmp.eq.s32.totalorder %s22, 0
      %p117 = por %p115, %p116
      %s119 = sadd.s32 %s118, 1
      %p122 = scmp.eq.s32.totalorder %s16, 1
      %p123 = scmp.ne.s32.totalorder %s118, %s120
      %p124 = scmp.eq.s32.totalorder %s16, 0
      %p125 = por %p123, %p124
      %p126 = scmp.ne.s32.totalorder %s118, %s120
      %p127 = scmp.eq.s32.totalorder %s21, 1
      %p128 = por %p126, %p127
      %p129 = scmp.ne.s32.totalorder %s120, %s121
      %p130 = scmp.eq.s32.totalorder %s21, 0
      %p131 = por %p129, %p130
      %p132 = scmp.ne.s32.totalorder %s120, %s121
      %p133 = scmp.eq.s32.totalorder %s22, 1
      %p134 = por %p132, %p133
      %p136 = scmp.ne.s32.totalorder %s121, %s135
      %p137 = scmp.eq.s32.totalorder %s22, 0
      %p138 = por %p136, %p137
      %s140 = sadd.s32 %s139, 1
      %p143 = scmp.eq.s32.totalorder %s16, 1
      %p144 = scmp.ne.s32.totalorder %s139, %s141
      %p145 = scmp.eq.s32.totalorder %s16, 0
      %p146 = por %p144, %p145
      %p147 = scmp.ne.s32.totalorder %s139, %s141
      %p148 = scmp.eq.s32.totalorder %s21, 1
      %p149 = por %p147, %p148
      %p150 = scmp.ne.s32.totalorder %s141, %s142
      %p151 = scmp.eq.s32.totalorder %s21, 0
      %p152 = por %p150, %p151
      %p153 = scmp.ne.s32.totalorder %s141, %s142
      %p154 = scmp.eq.s32.totalorder %s22, 1
      %p155 = por %p153, %p154
      %p157 = scmp.ne.s32.totalorder %s142, %s156
      %p158 = scmp.eq.s32.totalorder %s22, 0
      %p159 = por %p157, %p158
      %s160 = ssub.s32 %s16, %s23
      %p161 = scmp.eq.s32.totalorder %s160, 0
      %s163 = sadd.s32 %s162, 1
      %s164 = scalar_select %p161, %s162, %s163
      %p167 = pneg %p161
      %p168 = scmp.eq.s32.totalorder %s16, 1
      %p169 = por %p167, %p168
      %p170 = scmp.ne.s32.totalorder %s162, %s165
      %p171 = scmp.eq.s32.totalorder %s16, 0
      %p172 = por %p170, %p171
      %p173 = scmp.ne.s32.totalorder %s162, %s165
      %p174 = scmp.eq.s32.totalorder %s21, 1
      %p175 = por %p173, %p174
      %p176 = scmp.ne.s32.totalorder %s165, %s166
      %p177 = scmp.eq.s32.totalorder %s21, 0
      %p178 = por %p176, %p177
      %p179 = scmp.ne.s32.totalorder %s165, %s166
      %p180 = scmp.eq.s32.totalorder %s22, 1
      %p181 = por %p179, %p180
      %p183 = scmp.ne.s32.totalorder %s166, %s182
      %p184 = scmp.eq.s32.totalorder %s22, 0
      %p185 = por %p183, %p184
      %p186 = scmp.le.s32.totalorder 1, %s16
      %p187 = scmp.lt.s32.totalorder %s16, 3
      %p188 = pnand %p186, %p187
      %p189 = pneg %p188
      // Predicated region
      $region9: #{tpu_custom_call.1} parent=5 // pred_check
        _
      $region10: #{tpu_custom_call.1} parent=5 // pred_check_branch
        %191 = sbr.rel (%p188) target = $region12
      $region11: #{tpu_custom_call.1} parent=5 // pred_region
        %s192 = ssub.s32 %s16, 1
        // Predicated region
        $region13: #{tpu_custom_call.1} parent=11 // pred_check
          %p193 = pneg %p89
        $region14: #{tpu_custom_call.1} parent=11 // pred_check_branch
          %195 = sbr.rel (%p193) target = $region16
        $region15: #{tpu_custom_call.1} parent=11 // pred_region
          %s197 = ssub.s32 384, 384
          %198 = vsyncadd [#allocation4], %s197
          %s199 = sshll.u32 [#allocation3], 4
          %s200 = int_to_ptr.vmem [resolvable:$true] %s199
          %205 = dma.hbm_to_vmem [thread:$0]  %s2, 384, %s200, [#allocation4], 128, 128, 8
        $region16: #{tpu_custom_call.1} parent=11 // pred_fallthru
          _
        // Predicated region
        $region17: #{tpu_custom_call.1} parent=11 // pred_check
          %p206 = pneg %p110
        $region18: #{tpu_custom_call.1} parent=11 // pred_check_branch
          %208 = sbr.rel (%p206) target = $region20
        $region19: #{tpu_custom_call.1} parent=11 // pred_region
          _
        $region20: #{tpu_custom_call.1} parent=11 // pred_fallthru
          _
        // Predicated region
        $region21: #{tpu_custom_call.1} parent=11 // pred_check
          %p209 = pneg %p131
        $region22: #{tpu_custom_call.1} parent=11 // pred_check_branch
          %211 = sbr.rel (%p209) target = $region24
        $region23: #{tpu_custom_call.1} parent=11 // pred_region
          _
        $region24: #{tpu_custom_call.1} parent=11 // pred_fallthru
          _
        // Predicated region
        $region25: #{tpu_custom_call.1} parent=11 // pred_check
          %p212 = pneg %p152
        $region26: #{tpu_custom_call.1} parent=11 // pred_check_branch
          %214 = sbr.rel (%p212) target = $region28
        $region27: #{tpu_custom_call.1} parent=11 // pred_region
          _
        $region28: #{tpu_custom_call.1} parent=11 // pred_fallthru
          _
      $region12: #{tpu_custom_call.1} parent=5 // pred_fallthru
        _
      %p215 = scmp.lt.s32.totalorder %s16, 2
      // Predicated region
      $region29: #{tpu_custom_call.1} parent=5 // pred_check
        %p216 = pneg %p215
      $region30: #{tpu_custom_call.1} parent=5 // pred_check_branch
        %218 = sbr.rel (%p216) target = $region32
      $region31: #{tpu_custom_call.1} parent=5 // pred_region
        // Predicated region
        $region33: #{tpu_custom_call.1} parent=31 // pred_check
          %p219 = pneg %p36
        $region34: #{tpu_custom_call.1} parent=31 // pred_check_branch
          %221 = sbr.rel (%p219) target = $region36
        $region35: #{tpu_custom_call.1} parent=31 // pred_region
          %p222 = scmp.lt.s32.totalorder %s16, 1
          %s223 = scalar_select %p222, %s16, 1
          %s224 = smul.addr %s223, 2
          %s225 = smul.addr %s224, 8
          %s226 = scalar_lea.vmem %s0, %s225
        $region36: #{tpu_custom_call.1} parent=31 // pred_fallthru
          _
        // Predicated region
        $region37: #{tpu_custom_call.1} parent=31 // pred_check
          %p227 = pneg %p62
        $region38: #{tpu_custom_call.1} parent=31 // pred_check_branch
          %229 = sbr.rel (%p227) target = $region40
        $region39: #{tpu_custom_call.1} parent=31 // pred_region
          %p230 = scmp.lt.s32.totalorder %s16, 1
          %s231 = scalar_select %p230, %s16, 1
          %s232 = smul.addr %s231, 2
          %s233 = smul.addr %s232, 8
          %s234 = scalar_lea.vmem %s1, %s233
        $region40: #{tpu_custom_call.1} parent=31 // pred_fallthru
          _
      $region32: #{tpu_custom_call.1} parent=5 // pred_fallthru
        _
      %p235 = scmp.le.s32.totalorder 1, %s16
      %p236 = scmp.lt.s32.totalorder %s16, 3
      %p237 = pnand %p235, %p236
      %p238 = pneg %p237
      // Predicated region
      $region41: #{tpu_custom_call.1} parent=5 // pred_check
        _
      $region42: #{tpu_custom_call.1} parent=5 // pred_check_branch
        %240 = sbr.rel (%p237) target = $region44
      $region43: #{tpu_custom_call.1} parent=5 // pred_region
        %s241 = ssub.s32 %s16, 1
        // Predicated region
        $region45: #{tpu_custom_call.1} parent=43 // pred_check
          %p242 = pneg %p89
        $region46: #{tpu_custom_call.1} parent=43 // pred_check_branch
          %244 = sbr.rel (%p242) target = $region48
        $region47: #{tpu_custom_call.1} parent=43 // pred_region
          %245 = dma.done [#allocation4], 384
        $region48: #{tpu_custom_call.1} parent=43 // pred_fallthru
          _
        %p246 = scmp.lt.s32.totalorder %s21, 1
        %s247 = scalar_select %p246, %s21, 1
        %s248 = smul.addr %s247, 2
        %s249 = smul.addr %s248, 8
        %s250 = scalar_lea.vmem %s0, %s249
        %p251 = pneg %p42
        %p252 = pneg %p39
        %p253 = scmp.lt.s32.totalorder %s21, 1
        %s254 = scalar_select %p253, %s21, 1
        %s255 = smul.addr %s254, 2
        %s256 = smul.addr %s255, 8
        %s257 = scalar_lea.vmem %s1, %s256
        %p258 = pneg %p68
        %p259 = pneg %p65
        %p260 = pneg %p89
        %p261 = pneg %p86
        %p262 = pneg %p110
        %p263 = pneg %p107
        %p264 = pneg %p131
        %p265 = pneg %p128
        %p266 = pneg %p152
        %p267 = pneg %p149
        %p268 = pneg %p178
        %p269 = pneg %p175
        %s270 = sand.u32 %s165, 1
        %s271 = scalar_lea.sflag [#allocation5], %s270
        %s272 = sand.u32 %s165, 1
        %s273 = smul.addr %s272, 16
        %s274 = scalar_lea.vmem [#allocation6], %s273
        %p275 = scmp.lt.s32.totalorder %s21, 1
        %s276 = scalar_select %p275, %s21, 1
        %s277 = smul.addr %s276, 2
        %s278 = smul.addr %s277, 8
        %s279 = scalar_lea.vmem %s0, %s278
        %p280 = scmp.lt.s32.totalorder %s21, 1
        %s281 = scalar_select %p280, %s21, 1
        %s282 = smul.addr %s281, 2
        %s283 = smul.addr %s282, 8
        %s284 = scalar_lea.vmem %s1, %s283
        %v285 = vld [vmem:[%s279] sm:$0xff]
        %v286 = vld [vmem:[%s279 + $0x8] sm:$0xff]
        %v287 = vld [vmem:[#allocation3] sm:$0xff]
        %v288 = vld [vmem:[%s3] sm:$0x1]
        %v290 = vlaneseq
        %v291 = vshrl.u32 %v290, 7
        %v292 = vsub.s32 0, %v291
        %v293 = vrot.slane %v288, %v292
        %vm295 = vcmask 64512
        %v297 = vsel %vm295, %v285, 0
        %v300 = vsel %vm295, %v286, 0
        %302 = vmatprep.subr.mxu0 0.0
        %303 = vmatpush1.msra.mxu0 0.0
        %304 = vmatprep.subr.mxu0 0.0
        %305 = vmatpush1.msra.mxu0 0.0
        %306 = vmatprep.subr.mxu0 0.0
        %307 = vmatpush1.msra.mxu0 0.0
        %308 = vmatprep.subr.mxu0 0.0
        %309 = vmatpush1.msra.mxu0 0.0
        %310 = vmatprep.subr.mxu0 0.0
        %311 = vmatpush1.msra.mxu0 0.0
        %312 = vmatprep.subr.mxu0 0.0
        %313 = vmatpush1.msra.mxu0 0.0
        %314 = vmatprep.subr.mxu0 0.0
        %315 = vmatpush1.msra.mxu0 0.0
        %316 = vmatprep.subr.mxu0 0.0
        %317 = vmatpush1.msra.mxu0 0.0
        %318 = vmatprep.subr.mxu0 0.0
        %319 = vmatpush1.msra.mxu0 0.0
        %320 = vmatprep.subr.mxu0 0.0
        %321 = vmatpush1.msra.mxu0 0.0
        %322 = vmatprep.subr.mxu0 0.0
        %323 = vmatpush1.msra.mxu0 0.0
        %324 = vmatprep.subr.mxu0 0.0
        %325 = vmatpush1.msra.mxu0 0.0
        %326 = vmatprep.subr.mxu0 0.0
        %327 = vmatpush1.msra.mxu0 0.0
        %328 = vmatprep.subr.mxu0 0.0
        %329 = vmatpush1.msra.mxu0 0.0
        %330 = vmatprep.subr.mxu0 0.0
        %331 = vmatpush1.msra.mxu0 0.0
        %332 = vmatprep.subr.mxu0 0.0
        %333 = vmatpush1.msra.mxu0 %v287
        %334 = vmatprep.subr.mxu0 0.0
        %335 = vmatpush2.msra.mxu0 0.0
        %336 = vmatprep.subr.mxu0 0.0
        %337 = vmatpush2.msra.mxu0 0.0
        %338 = vmatprep.subr.mxu0 0.0
        %339 = vmatpush2.msra.mxu0 0.0
        %340 = vmatprep.subr.mxu0 0.0
        %341 = vmatpush2.msra.mxu0 0.0
        %342 = vmatprep.subr.mxu0 0.0
        %343 = vmatpush2.msra.mxu0 0.0
        %344 = vmatprep.subr.mxu0 0.0
        %345 = vmatpush2.msra.mxu0 0.0
        %346 = vmatprep.subr.mxu0 0.0
        %347 = vmatpush2.msra.mxu0 0.0
        %348 = vmatprep.subr.mxu0 0.0
        %349 = vmatpush2.msra.mxu0 0.0
        %350 = vmatprep.subr.mxu0 0.0
        %351 = vmatpush2.msra.mxu0 0.0
        %352 = vmatprep.subr.mxu0 0.0
        %353 = vmatpush2.msra.mxu0 0.0
        %354 = vmatprep.subr.mxu0 0.0
        %355 = vmatpush2.msra.mxu0 0.0
        %356 = vmatprep.subr.mxu0 0.0
        %357 = vmatpush2.msra.mxu0 0.0
        %358 = vmatprep.subr.mxu0 0.0
        %359 = vmatpush2.msra.mxu0 0.0
        %360 = vmatprep.subr.mxu0 0.0
        %361 = vmatpush2.msra.mxu0 0.0
        %362 = vmatprep.subr.mxu0 0.0
        %363 = vmatpush2.msra.mxu0 0.0
        %364 = vmatprep.subr.mxu0 0.0
        %365 = vmatpush2.msra.mxu0 0.0
        %366 = vmatprep.mubr.f32.mxu0 0.0
        %367 = vmatmul.mubr.f32.gmra.mxu0 %v297
        %v368 = vpop.f32.mrf.mxu0
        %v369 = vadd.f32 %v293, %v368
        %v370 = vpop.f32.mrf.mxu0
        %371 = vmatprep.mubr.f32.mxu0 0.0
        %372 = vmatmul.mubr.f32.gmra.mxu0 %v300
        %v373 = vpop.f32.mrf.mxu0
        %v374 = vadd.f32 %v293, %v373
        %v375 = vpop.f32.mrf.mxu0
        %376 = vdwg.mxu0
        %vm377 = vcmask 261120
        %378 = vst.msk [vmem:[#allocation2] sm:$0xff] %vm377, %v369
        %379 = vst.msk [vmem:[#allocation2 + $0x8] sm:$0xff] %vm377, %v374
        %s380 = scalar_lea.vmem [#allocation3], 8
        %v381 = vld [vmem:[%s380] sm:$0xff]
        %s382 = scalar_lea.vmem %s3, 1
        %v383 = vld [vmem:[%s382] sm:$0x1]
        %v385 = vlaneseq
        %v386 = vshrl.u32 %v385, 7
        %v387 = vsub.s32 0, %v386
        %v388 = vrot.slane %v383, %v387
        %390 = vmatprep.subr.mxu0 0.0
        %391 = vmatpush1.msra.mxu0 0.0
        %392 = vmatprep.subr.mxu0 0.0
        %393 = vmatpush1.msra.mxu0 0.0
        %394 = vmatprep.subr.mxu0 0.0
        %395 = vmatpush1.msra.mxu0 0.0
        %396 = vmatprep.subr.mxu0 0.0
        %397 = vmatpush1.msra.mxu0 0.0
        %398 = vmatprep.subr.mxu0 0.0
        %399 = vmatpush1.msra.mxu0 0.0
        %400 = vmatprep.subr.mxu0 0.0
        %401 = vmatpush1.msra.mxu0 0.0
        %402 = vmatprep.subr.mxu0 0.0
        %403 = vmatpush1.msra.mxu0 0.0
        %404 = vmatprep.subr.mxu0 0.0
        %405 = vmatpush1.msra.mxu0 0.0
        %406 = vmatprep.subr.mxu0 0.0
        %407 = vmatpush1.msra.mxu0 0.0
        %408 = vmatprep.subr.mxu0 0.0
        %409 = vmatpush1.msra.mxu0 0.0
        %410 = vmatprep.subr.mxu0 0.0
        %411 = vmatpush1.msra.mxu0 0.0
        %412 = vmatprep.subr.mxu0 0.0
        %413 = vmatpush1.msra.mxu0 0.0
        %414 = vmatprep.subr.mxu0 0.0
        %415 = vmatpush1.msra.mxu0 0.0
        %416 = vmatprep.subr.mxu0 0.0
        %417 = vmatpush1.msra.mxu0 0.0
        %418 = vmatprep.subr.mxu0 0.0
        %419 = vmatpush1.msra.mxu0 0.0
        %420 = vmatprep.subr.mxu0 0.0
        %421 = vmatpush1.msra.mxu0 %v381
        %422 = vmatprep.subr.mxu0 0.0
        %423 = vmatpush2.msra.mxu0 0.0
        %424 = vmatprep.subr.mxu0 0.0
        %425 = vmatpush2.msra.mxu0 0.0
        %426 = vmatprep.subr.mxu0 0.0
        %427 = vmatpush2.msra.mxu0 0.0
        %428 = vmatprep.subr.mxu0 0.0
        %429 = vmatpush2.msra.mxu0 0.0
        %430 = vmatprep.subr.mxu0 0.0
        %431 = vmatpush2.msra.mxu0 0.0
        %432 = vmatprep.subr.mxu0 0.0
        %433 = vmatpush2.msra.mxu0 0.0
        %434 = vmatprep.subr.mxu0 0.0
        %435 = vmatpush2.msra.mxu0 0.0
        %436 = vmatprep.subr.mxu0 0.0
        %437 = vmatpush2.msra.mxu0 0.0
        %438 = vmatprep.subr.mxu0 0.0
        %439 = vmatpush2.msra.mxu0 0.0
        %440 = vmatprep.subr.mxu0 0.0
        %441 = vmatpush2.msra.mxu0 0.0
        %442 = vmatprep.subr.mxu0 0.0
        %443 = vmatpush2.msra.mxu0 0.0
        %444 = vmatprep.subr.mxu0 0.0
        %445 = vmatpush2.msra.mxu0 0.0
        %446 = vmatprep.subr.mxu0 0.0
        %447 = vmatpush2.msra.mxu0 0.0
        %448 = vmatprep.subr.mxu0 0.0
        %449 = vmatpush2.msra.mxu0 0.0
        %450 = vmatprep.subr.mxu0 0.0
        %451 = vmatpush2.msra.mxu0 0.0
        %452 = vmatprep.subr.mxu0 0.0
        %453 = vmatpush2.msra.mxu0 0.0
        %454 = vmatprep.mubr.f32.mxu0 0.0
        %455 = vmatmul.mubr.f32.gmra.mxu0 %v297
        %v456 = vpop.f32.mrf.mxu0
        %v457 = vadd.f32 %v388, %v456
        %v458 = vpop.f32.mrf.mxu0
        %459 = vmatprep.mubr.f32.mxu0 0.0
        %460 = vmatmul.mubr.f32.gmra.mxu0 %v300
        %v461 = vpop.f32.mrf.mxu0
        %v462 = vadd.f32 %v388, %v461
        %v463 = vpop.f32.mrf.mxu0
        %464 = vdwg.mxu0
        %465 = vst.msk [vmem:[#allocation2 + $0x10] sm:$0xff] %vm377, %v457
        %466 = vst.msk [vmem:[#allocation2 + $0x18] sm:$0xff] %vm377, %v462
        %s467 = scalar_lea.vmem [#allocation3], 16
        %v468 = vld [vmem:[%s467] sm:$0xff]
        %s469 = scalar_lea.vmem %s3, 2
        %v470 = vld [vmem:[%s469] sm:$0x1]
        %v472 = vlaneseq
        %v473 = vshrl.u32 %v472, 7
        %v474 = vsub.s32 0, %v473
        %v475 = vrot.slane %v470, %v474
        %477 = vmatprep.subr.mxu0 0.0
        %478 = vmatpush1.msra.mxu0 0.0
        %479 = vmatprep.subr.mxu0 0.0
        %480 = vmatpush1.msra.mxu0 0.0
        %481 = vmatprep.subr.mxu0 0.0
        %482 = vmatpush1.msra.mxu0 0.0
        %483 = vmatprep.subr.mxu0 0.0
        %484 = vmatpush1.msra.mxu0 0.0
        %485 = vmatprep.subr.mxu0 0.0
        %486 = vmatpush1.msra.mxu0 0.0
        %487 = vmatprep.subr.mxu0 0.0
        %488 = vmatpush1.msra.mxu0 0.0
        %489 = vmatprep.subr.mxu0 0.0
        %490 = vmatpush1.msra.mxu0 0.0
        %491 = vmatprep.subr.mxu0 0.0
        %492 = vmatpush1.msra.mxu0 0.0
        %493 = vmatprep.subr.mxu0 0.0
        %494 = vmatpush1.msra.mxu0 0.0
        %495 = vmatprep.subr.mxu0 0.0
        %496 = vmatpush1.msra.mxu0 0.0
        %497 = vmatprep.subr.mxu0 0.0
        %498 = vmatpush1.msra.mxu0 0.0
        %499 = vmatprep.subr.mxu0 0.0
        %500 = vmatpush1.msra.mxu0 0.0
        %501 = vmatprep.subr.mxu0 0.0
        %502 = vmatpush1.msra.mxu0 0.0
        %503 = vmatprep.subr.mxu0 0.0
        %504 = vmatpush1.msra.mxu0 0.0
        %505 = vmatprep.subr.mxu0 0.0
        %506 = vmatpush1.msra.mxu0 0.0
        %507 = vmatprep.subr.mxu0 0.0
        %508 = vmatpush1.msra.mxu0 %v468
        %509 = vmatprep.subr.mxu0 0.0
        %510 = vmatpush2.msra.mxu0 0.0
        %511 = vmatprep.subr.mxu0 0.0
        %512 = vmatpush2.msra.mxu0 0.0
        %513 = vmatprep.subr.mxu0 0.0
        %514 = vmatpush2.msra.mxu0 0.0
        %515 = vmatprep.subr.mxu0 0.0
        %516 = vmatpush2.msra.mxu0 0.0
        %517 = vmatprep.subr.mxu0 0.0
        %518 = vmatpush2.msra.mxu0 0.0
        %519 = vmatprep.subr.mxu0 0.0
        %520 = vmatpush2.msra.mxu0 0.0
        %521 = vmatprep.subr.mxu0 0.0
        %522 = vmatpush2.msra.mxu0 0.0
        %523 = vmatprep.subr.mxu0 0.0
        %524 = vmatpush2.msra.mxu0 0.0
        %525 = vmatprep.subr.mxu0 0.0
        %526 = vmatpush2.msra.mxu0 0.0
        %527 = vmatprep.subr.mxu0 0.0
        %528 = vmatpush2.msra.mxu0 0.0
        %529 = vmatprep.subr.mxu0 0.0
        %530 = vmatpush2.msra.mxu0 0.0
        %531 = vmatprep.subr.mxu0 0.0
        %532 = vmatpush2.msra.mxu0 0.0
        %533 = vmatprep.subr.mxu0 0.0
        %534 = vmatpush2.msra.mxu0 0.0
        %535 = vmatprep.subr.mxu0 0.0
        %536 = vmatpush2.msra.mxu0 0.0
        %537 = vmatprep.subr.mxu0 0.0
        %538 = vmatpush2.msra.mxu0 0.0
        %539 = vmatprep.subr.mxu0 0.0
        %540 = vmatpush2.msra.mxu0 0.0
        %541 = vmatprep.mubr.f32.mxu0 0.0
        %542 = vmatmul.mubr.f32.gmra.mxu0 %v297
        %v543 = vpop.f32.mrf.mxu0
        %v544 = vadd.f32 %v475, %v543
        %v545 = vpop.f32.mrf.mxu0
        %546 = vmatprep.mubr.f32.mxu0 0.0
        %547 = vmatmul.mubr.f32.gmra.mxu0 %v300
        %v548 = vpop.f32.mrf.mxu0
        %v549 = vadd.f32 %v475, %v548
        %v550 = vpop.f32.mrf.mxu0
        %551 = vdwg.mxu0
        %552 = vst.msk [vmem:[#allocation2 + $0x20] sm:$0xff] %vm377, %v544
        %553 = vst.msk [vmem:[#allocation2 + $0x28] sm:$0xff] %vm377, %v549
        %v554 = vld [vmem:[%s4] sm:$0xff]
        %v555 = vld [vmem:[%s5] sm:$0x1]
        %v557 = vlaneseq
        %v558 = vshrl.u32 %v557, 7
        %v559 = vsub.s32 0, %v558
        %v560 = vrot.slane %v555, %v559
        %562 = vmatprep.subr.mxu0 0.0
        %563 = vmatpush1.msra.mxu0 0.0
        %564 = vmatprep.subr.mxu0 0.0
        %565 = vmatpush1.msra.mxu0 0.0
        %566 = vmatprep.subr.mxu0 0.0
        %567 = vmatpush1.msra.mxu0 0.0
        %568 = vmatprep.subr.mxu0 0.0
        %569 = vmatpush1.msra.mxu0 0.0
        %570 = vmatprep.subr.mxu0 0.0
        %571 = vmatpush1.msra.mxu0 0.0
        %572 = vmatprep.subr.mxu0 0.0
        %573 = vmatpush1.msra.mxu0 0.0
        %574 = vmatprep.subr.mxu0 0.0
        %575 = vmatpush1.msra.mxu0 0.0
        %576 = vmatprep.subr.mxu0 0.0
        %577 = vmatpush1.msra.mxu0 0.0
        %578 = vmatprep.subr.mxu0 0.0
        %579 = vmatpush1.msra.mxu0 0.0
        %580 = vmatprep.subr.mxu0 0.0
        %581 = vmatpush1.msra.mxu0 0.0
        %582 = vmatprep.subr.mxu0 0.0
        %583 = vmatpush1.msra.mxu0 0.0
        %584 = vmatprep.subr.mxu0 0.0
        %585 = vmatpush1.msra.mxu0 0.0
        %586 = vmatprep.subr.mxu0 0.0
        %587 = vmatpush1.msra.mxu0 0.0
        %588 = vmatprep.subr.mxu0 0.0
        %589 = vmatpush1.msra.mxu0 0.0
        %590 = vmatprep.subr.mxu0 0.0
        %591 = vmatpush1.msra.mxu0 0.0
        %592 = vmatprep.subr.mxu0 0.0
        %593 = vmatpush1.msra.mxu0 %v554
        %594 = vmatprep.subr.mxu0 0.0
        %595 = vmatpush2.msra.mxu0 0.0
        %596 = vmatprep.subr.mxu0 0.0
        %597 = vmatpush2.msra.mxu0 0.0
        %598 = vmatprep.subr.mxu0 0.0
        %599 = vmatpush2.msra.mxu0 0.0
        %600 = vmatprep.subr.mxu0 0.0
        %601 = vmatpush2.msra.mxu0 0.0
        %602 = vmatprep.subr.mxu0 0.0
        %603 = vmatpush2.msra.mxu0 0.0
        %604 = vmatprep.subr.mxu0 0.0
        %605 = vmatpush2.msra.mxu0 0.0
        %606 = vmatprep.subr.mxu0 0.0
        %607 = vmatpush2.msra.mxu0 0.0
        %608 = vmatprep.subr.mxu0 0.0
        %609 = vmatpush2.msra.mxu0 0.0
        %610 = vmatprep.subr.mxu0 0.0
        %611 = vmatpush2.msra.mxu0 0.0
        %612 = vmatprep.subr.mxu0 0.0
        %613 = vmatpush2.msra.mxu0 0.0
        %614 = vmatprep.subr.mxu0 0.0
        %615 = vmatpush2.msra.mxu0 0.0
        %616 = vmatprep.subr.mxu0 0.0
        %617 = vmatpush2.msra.mxu0 0.0
        %618 = vmatprep.subr.mxu0 0.0
        %619 = vmatpush2.msra.mxu0 0.0
        %620 = vmatprep.subr.mxu0 0.0
        %621 = vmatpush2.msra.mxu0 0.0
        %622 = vmatprep.subr.mxu0 0.0
        %623 = vmatpush2.msra.mxu0 0.0
        %624 = vmatprep.subr.mxu0 0.0
        %625 = vmatpush2.msra.mxu0 0.0
        %626 = vmatprep.mubr.f32.mxu0 0.0
        %627 = vmatmul.mubr.f32.gmra.mxu0 %v297
        %v628 = vpop.f32.mrf.mxu0
        %v629 = vadd.f32 %v560, %v628
        %v630 = vpop.f32.mrf.mxu0
        %631 = vmatprep.mubr.f32.mxu0 0.0
        %632 = vmatmul.mubr.f32.gmra.mxu0 %v300
        %v633 = vpop.f32.mrf.mxu0
        %v634 = vadd.f32 %v560, %v633
        %v635 = vpop.f32.mrf.mxu0
        %636 = vdwg.mxu0
        %v637 = vld [vmem:[%s284] sm:$0xff]
        %v638 = vld [vmem:[%s284 + $0x8] sm:$0xff]
        %v639 = vld [vmem:[#allocation2] sm:$0xff]
        %v640 = vld [vmem:[#allocation2 + $0x8] sm:$0xff]
        %v641 = vld [vmem:[#allocation2 + $0x10] sm:$0xff]
        %v642 = vld [vmem:[#allocation2 + $0x18] sm:$0xff]
        %v643 = vld [vmem:[#allocation2 + $0x20] sm:$0xff]
        %v644 = vld [vmem:[#allocation2 + $0x28] sm:$0xff]
        %vm645 = vcmask 392192
        %v647 = vsel %vm645, %v637, 0
        %v650 = vsel %vm645, %v638, 0
        %652 = vmatprep.subr.mxu0 0.0
        %653 = vmatpush1.msra.mxu0 0.0
        %654 = vmatprep.subr.mxu0 0.0
        %655 = vmatpush1.msra.mxu0 0.0
        %656 = vmatprep.subr.mxu0 0.0
        %657 = vmatpush1.msra.mxu0 0.0
        %658 = vmatprep.subr.mxu0 0.0
        %659 = vmatpush1.msra.mxu0 0.0
        %660 = vmatprep.subr.mxu0 0.0
        %661 = vmatpush1.msra.mxu0 0.0
        %662 = vmatprep.subr.mxu0 0.0
        %663 = vmatpush1.msra.mxu0 0.0
        %664 = vmatprep.subr.mxu0 0.0
        %665 = vmatpush1.msra.mxu0 0.0
        %666 = vmatprep.subr.mxu0 0.0
        %667 = vmatpush1.msra.mxu0 0.0
        %668 = vmatprep.subr.mxu0 0.0
        %669 = vmatpush1.msra.mxu0 0.0
        %670 = vmatprep.subr.mxu0 0.0
        %671 = vmatpush1.msra.mxu0 0.0
        %672 = vmatprep.subr.mxu0 0.0
        %673 = vmatpush1.msra.mxu0 %v644
        %674 = vmatprep.subr.mxu0 0.0
        %675 = vmatpush1.msra.mxu0 %v643
        %676 = vmatprep.subr.mxu0 0.0
        %677 = vmatpush1.msra.mxu0 %v642
        %678 = vmatprep.subr.mxu0 0.0
        %679 = vmatpush1.msra.mxu0 %v641
        %680 = vmatprep.subr.mxu0 0.0
        %681 = vmatpush1.msra.mxu0 %v640
        %682 = vmatprep.subr.mxu0 0.0
        %683 = vmatpush1.msra.mxu0 %v639
        %684 = vmatprep.subr.mxu0 0.0
        %685 = vmatpush2.msra.mxu0 0.0
        %686 = vmatprep.subr.mxu0 0.0
        %687 = vmatpush2.msra.mxu0 0.0
        %688 = vmatprep.subr.mxu0 0.0
        %689 = vmatpush2.msra.mxu0 0.0
        %690 = vmatprep.subr.mxu0 0.0
        %691 = vmatpush2.msra.mxu0 0.0
        %692 = vmatprep.subr.mxu0 0.0
        %693 = vmatpush2.msra.mxu0 0.0
        %694 = vmatprep.subr.mxu0 0.0
        %695 = vmatpush2.msra.mxu0 0.0
        %696 = vmatprep.subr.mxu0 0.0
        %697 = vmatpush2.msra.mxu0 0.0
        %698 = vmatprep.subr.mxu0 0.0
        %699 = vmatpush2.msra.mxu0 0.0
        %700 = vmatprep.subr.mxu0 0.0
        %701 = vmatpush2.msra.mxu0 0.0
        %702 = vmatprep.subr.mxu0 0.0
        %703 = vmatpush2.msra.mxu0 0.0
        %704 = vmatprep.subr.mxu0 0.0
        %705 = vmatpush2.msra.mxu0 0.0
        %706 = vmatprep.subr.mxu0 0.0
        %707 = vmatpush2.msra.mxu0 0.0
        %708 = vmatprep.subr.mxu0 0.0
        %709 = vmatpush2.msra.mxu0 0.0
        %710 = vmatprep.subr.mxu0 0.0
        %711 = vmatpush2.msra.mxu0 0.0
        %712 = vmatprep.subr.mxu0 0.0
        %713 = vmatpush2.msra.mxu0 0.0
        %714 = vmatprep.subr.mxu0 0.0
        %715 = vmatpush2.msra.mxu0 0.0
        %716 = vmatprep.mubr.f32.mxu0 0.0
        %717 = vmatmul.mubr.f32.gmra.mxu0 %v647
        %v718 = vpop.f32.mrf.mxu0
        %v719 = vadd.f32 %v629, %v718
        %v720 = vpop.f32.mrf.mxu0
        %721 = vmatprep.mubr.f32.mxu0 0.0
        %722 = vmatmul.mubr.f32.gmra.mxu0 %v650
        %v723 = vpop.f32.mrf.mxu0
        %v724 = vadd.f32 %v634, %v723
        %v725 = vpop.f32.mrf.mxu0
        %726 = vdwg.mxu0
        %v727 = vtanh.pop %v719
        %v728 = vtanh.pop %v724
        %729 = vst.msk [vmem:[%s274] sm:$0xff] %vm377, %v727
        %730 = vst.msk [vmem:[%s274 + $0x8] sm:$0xff] %vm377, %v728
        %s731 = sand.u32 %s165, 1
        %s732 = scalar_lea.sflag [#allocation5], %s731
        %s733 = sand.u32 %s165, 1
        %s734 = smul.addr %s733, 16
        %s735 = scalar_lea.vmem [#allocation6], %s734
        // Predicated region
        $region49: #{tpu_custom_call.1} parent=43 // pred_check
          %p736 = pneg %p175
        $region50: #{tpu_custom_call.1} parent=43 // pred_check_branch
          %738 = sbr.rel (%p736) target = $region52
        $region51: #{tpu_custom_call.1} parent=43 // pred_region
          %s740 = ssub.s32 256, 256
          %741 = vsyncadd %s732, %s740
          %s742 = smul.addr %s21, 2
          %s743 = smul.addr %s742, 128
          %s744 = scalar_lea.hbm %s6, %s743
          %s745 = sshll.u32 %s735, 4
          %s746 = int_to_ptr.vmem [resolvable:$true] %s745
          %751 = dma.vmem_to_hbm [thread:$0]  %s746, 256, %s744, %s732, 128, 128, 8
        $region52: #{tpu_custom_call.1} parent=43 // pred_fallthru
          _
      $region44: #{tpu_custom_call.1} parent=5 // pred_fallthru
        _
      %p752 = scmp.le.s32.totalorder 2, %s16
      // Predicated region
      $region53: #{tpu_custom_call.1} parent=5 // pred_check
        %p753 = pneg %p752
      $region54: #{tpu_custom_call.1} parent=5 // pred_check_branch
        %755 = sbr.rel (%p753) target = $region56
      $region55: #{tpu_custom_call.1} parent=5 // pred_region
        %s756 = ssub.s32 %s16, 2
        // Predicated region
        $region57: #{tpu_custom_call.1} parent=55 // pred_check
          %p757 = pneg %p181
        $region58: #{tpu_custom_call.1} parent=55 // pred_check_branch
          %759 = sbr.rel (%p757) target = $region60
        $region59: #{tpu_custom_call.1} parent=55 // pred_region
          %s760 = sand.u32 %s166, 1
          %s761 = scalar_lea.sflag [#allocation5], %s760
          %s762 = sand.u32 %s166, 1
          %s763 = smul.addr %s762, 16
          %s764 = scalar_lea.vmem [#allocation6], %s763
          %765 = dma.done %s761, 256
        $region60: #{tpu_custom_call.1} parent=55 // pred_fallthru
          _
      $region56: #{tpu_custom_call.1} parent=5 // pred_fallthru
        _
    $region6: #{tpu_custom_call.1} parent=1 // loop_footer
      %s20 = sadd.s32 1, %s16
    $region7: #{tpu_custom_call.1} parent=1 // loop_footer_branch
      %15 = sbr.rel target = $region3
    $region8: #{tpu_custom_call.1} parent=1 // loop_exit
      _
    %766 = vsyncpa [#allocation4], 1
    %s767 = scalar_lea.sflag [#allocation4], 1
    %768 = vsyncpa %s767, 1
    %769 = vsyncpa [#allocation5], 1
    %s770 = scalar_lea.sflag [#allocation5], 1
    %771 = vsyncpa %s770, 1

</llo_original>
